<compile_context>
chip_gen: v6e
topology: v6e:2x2x1
jax: 0.10.0
libtpu: 0.0.40
codegen_flags: <defaults>
</compile_context>

<pallas_src>
import functools

import numpy as np
import jax
import jax.numpy as jnp
from jax.experimental import pallas as pl
from jax.experimental.pallas import tpu as pltpu


def _round_up(a, b):
    return (a + b - 1) // b * b


# ---------------------------------------------------------------------------
# Parameter construction (deterministic, mirrors STFT.__init__)
# ---------------------------------------------------------------------------
def make_forward_basis(filter_length, win_length=None, window="hann"):
    win_length = win_length if win_length else filter_length
    assert filter_length >= win_length

    fourier_basis = np.fft.fft(np.eye(filter_length))
    cutoff = filter_length // 2 + 1
    fourier_basis = np.vstack(
        [np.real(fourier_basis[:cutoff, :]), np.imag(fourier_basis[:cutoff, :])]
    )  # (2*cutoff, filter_length)

    # scipy.signal.get_window('hann', M, fftbins=True) == periodic Hann
    if window == "hann":
        n = np.arange(win_length)
        fft_window = 0.5 - 0.5 * np.cos(2.0 * np.pi * n / win_length)
    else:
        fft_window = np.ones(win_length)

    # pad_center(fft_window, size=filter_length)
    lpad = (filter_length - win_length) // 2
    fft_window = np.pad(fft_window, (lpad, filter_length - win_length - lpad))

    forward_basis = fourier_basis * fft_window[None, :]  # (2C, N)
    return forward_basis.astype(np.float32), cutoff


@functools.lru_cache(maxsize=16)
def _prepared_basis(filter_length, win_length, window):
    """Sublane-padded (2*c_sub, filter_length) bf16 basis, built + H2D'd once."""
    fwd, cutoff = make_forward_basis(filter_length, win_length, window)
    c_sub = _round_up(cutoff, 8)            # sublane-aligned real/imag split
    basis = np.zeros((2 * c_sub, filter_length), np.float32)
    basis[:cutoff, :] = fwd[:cutoff, :]                 # real rows
    basis[c_sub:c_sub + cutoff, :] = fwd[cutoff:, :]    # imag rows
    return jnp.asarray(basis, dtype=jnp.bfloat16), cutoff, c_sub


# ---------------------------------------------------------------------------
# Pallas kernel: one K=filter_length contraction + magnitude, (C, T) output
# ---------------------------------------------------------------------------
def stft_kernel(x_ref, basis_ref, o_ref, *, c_sub):
    # x_ref:     (TILE_T, filter_length)   bf16  im2col frames tile
    # basis_ref: (2*c_sub, filter_length)  bf16  windowed Fourier basis (resident)
    # o_ref:     (c_sub, TILE_T)           f32   magnitude tile in (C, T) layout
    acc = jax.lax.dot_general(
        basis_ref[...], x_ref[...],
        dimension_numbers=(((1,), (1,)), ((), ())),     # contract K on both
        preferred_element_type=jnp.float32)             # (2*c_sub, TILE_T)
    real = acc[:c_sub, :]      # sublane-aligned split (c_sub % 8 == 0) -> free
    imag = acc[c_sub:, :]
    o_ref[...] = jnp.sqrt(real * real + imag * imag)


# ---------------------------------------------------------------------------
# Wrapper: reflect pad, im2col frames, pallas_call, drop padding
# ---------------------------------------------------------------------------
def stft_magnitude(x, *, filter_length, hop_length, win_length=None,
                   window="hann", tile_t_max=512):
    """x: (B, num_samples) float32.  Returns (B, cutoff, num_frames) float32."""
    assert filter_length % hop_length == 0, (
        "shifted-row im2col requires hop_length | filter_length")
    # TODO(synk): general hop (not dividing filter_length) would need a
    # gcd-sized row unit; the reference torch-stft config (1024/512) satisfies this.

    B, num_samples = x.shape
    pad = filter_length // 2
    assert num_samples > pad, (
        "reflect padding requires num_samples > filter_length // 2")
    n_shifts = filter_length // hop_length

    basis, cutoff, c_sub = _prepared_basis(
        filter_length, win_length if win_length else filter_length, window)

    # F.pad(..., mode='reflect') == jnp.pad reflect (no edge repeat)
    xp = jnp.pad(x, ((0, 0), (pad, pad)), mode="reflect")  # (B, L_pad)
    l_pad = xp.shape[-1]
    n_frames = (l_pad - filter_length) // hop_length + 1

    # Frame-tile size: large to amortize per-step overhead; bf16 input blocks
    # need 16-row sublane alignment.  If B == 1 and everything fits one tile,
    # split the frame axis (128-aligned: output lane dim) so both v7x
    # TensorCores get a grid point.
    tile_t = min(tile_t_max, _round_up(n_frames, 16))
    n_tiles = pl.cdiv(n_frames, tile_t)
    if B * n_tiles < 2 and n_frames > 128:
        tile_t = _round_up(pl.cdiv(n_frames, 2), 128)
        n_tiles = pl.cdiv(n_frames, tile_t)
    t_pad = n_tiles * tile_t

    # im2col frame matrix (B, t_pad, filter_length): one bf16 cast of the
    # padded waveform + one concat of the n_shifts shifted row views.
    # Frame t, tap j*hop + k  ==  xp[b, (t + j) * hop + k].
    xpb = xp.astype(jnp.bfloat16)
    rows_needed = t_pad + n_shifts - 1
    total = rows_needed * hop_length
    if total > l_pad:
        xpb = jnp.pad(xpb, ((0, 0), (0, total - l_pad)))
    else:
        xpb = xpb[:, :total]
    rows = xpb.reshape(B, rows_needed, hop_length)
    frames = jnp.concatenate(
        [rows[:, j:j + t_pad, :] for j in range(n_shifts)], axis=-1)

    kernel = functools.partial(stft_kernel, c_sub=c_sub)

    out = pl.pallas_call(
        kernel,
        out_shape=jax.ShapeDtypeStruct((B, c_sub, t_pad), jnp.float32),
        grid_spec=pltpu.PrefetchScalarGridSpec(
            num_scalar_prefetch=0,
            grid=(B, n_tiles),
            in_specs=[
                pl.BlockSpec((None, tile_t, filter_length),
                             lambda b, t: (b, t, 0)),
                pl.BlockSpec((2 * c_sub, filter_length),
                             lambda b, t: (0, 0)),        # resident basis
            ],
            out_specs=pl.BlockSpec((None, c_sub, tile_t),
                                   lambda b, t: (b, 0, t)),
        ),
        compiler_params=pltpu.CompilerParams(
            dimension_semantics=("parallel", "parallel"),
            vmem_limit_bytes=32 * 1024 * 1024,
        ),
    )(frames, basis)

    # Kernel already emits PyTorch's (B, C, T) layout; drop padding only.
    return out[:, :cutoff, :n_frames]


# ---------------------------------------------------------------------------
# Pure-numpy reference (mirrors the PyTorch forward exactly)
# ---------------------------------------------------------------------------
def stft_magnitude_ref(x, basis_2c_n, *, filter_length, hop_length, cutoff):
    x = np.asarray(x)
    pad = filter_length // 2
    xp = np.pad(x, ((0, 0), (pad, pad)), mode="reflect")
    B, l_pad = xp.shape
    n_frames = (l_pad - filter_length) // hop_length + 1
    frames = np.stack(
        [xp[:, t * hop_length: t * hop_length + filter_length] for t in range(n_frames)],
        axis=1,
    )  # (B, T, N)
    ft = np.einsum("btn,cn->bct", frames, basis_2c_n)  # (B, 2C, T)
    real, imag = ft[:, :cutoff, :], ft[:, cutoff:, :]
    return np.sqrt(real**2 + imag**2)


if __name__ == "__main__":
    # Small shapes consistent with the module semantics (filter/hop ratio = 2,
    # same as the default 1024/512 config).
    filter_length = 32
    hop_length = 16
    batch = 2
    num_samples = 256

    key = jax.random.PRNGKey(0)
    x = jax.random.normal(key, (batch, num_samples), dtype=jnp.float32)

    mag = stft_magnitude(
        x, filter_length=filter_length, hop_length=hop_length
    )
    mag = jax.block_until_ready(mag)

    basis, cutoff = make_forward_basis(filter_length)
    ref = stft_magnitude_ref(
        np.asarray(x), basis, filter_length=filter_length,
        hop_length=hop_length, cutoff=cutoff
    )

    assert mag.shape == ref.shape, (mag.shape, ref.shape)
    assert np.allclose(np.asarray(mag), ref, rtol=5e-2, atol=5e-2)

    print("KERNEL_OK")
</pallas_src>

<mosaic_0001>
module attributes {stable_mosaic.version = 11 : i64} {
  func.func @stft_kernel(%arg0: i32, %arg1: i32, %arg2: memref<1x32x32xbf16, #tpu.memory_space<vmem>>, %arg3: memref<48x32xbf16, #tpu.memory_space<vmem>>, %arg4: memref<1x24x32xf32, #tpu.memory_space<vmem>>) attributes {dimension_semantics = [#tpu.dimension_semantics<parallel>, #tpu.dimension_semantics<parallel>], iteration_bounds = array<i64: 2, 1>, scalar_prefetch = 0 : i64, scratch_operands = 0 : i64, tpu.core_type = #tpu.core_type<tc>, window_params = [{transform_indices = @transform_0, window_bounds = array<i64: 1, 32, 32>}, {pipeline_mode = #tpu.pipeline_mode<synchronous>, transform_indices = @transform_1, window_bounds = array<i64: 48, 32>}, {transform_indices = @transform_2, window_bounds = array<i64: 1, 24, 32>}]} {
    %c0 = arith.constant 0 : index
    %c0_0 = arith.constant 0 : index
    %0 = vector.load %arg3[%c0, %c0_0] : memref<48x32xbf16, #tpu.memory_space<vmem>>, vector<48x32xbf16>
    %c0_1 = arith.constant 0 : index
    %c0_2 = arith.constant 0 : index
    %c0_3 = arith.constant 0 : index
    %1 = vector.load %arg2[%c0_1, %c0_2, %c0_3] : memref<1x32x32xbf16, #tpu.memory_space<vmem>>, vector<1x32x32xbf16>
    %2 = vector.shape_cast %1 : vector<1x32x32xbf16> to vector<32x32xbf16>
    %cst = arith.constant dense<0.000000e+00> : vector<48x32xf32>
    %3 = tpu.matmul %0, %2, %cst {dimension_numbers = #tpu.dot_dimension_numbers<[1], [1], [0], [0], [0, 0, 1, 0], [], []>} : vector<48x32xbf16>, vector<32x32xbf16>, vector<48x32xf32> -> vector<48x32xf32>
    %4 = vector.extract_strided_slice %3 {offsets = [0, 0], sizes = [24, 32], strides = [1, 1]} : vector<48x32xf32> to vector<24x32xf32>
    %5 = vector.extract_strided_slice %3 {offsets = [24, 0], sizes = [24, 32], strides = [1, 1]} : vector<48x32xf32> to vector<24x32xf32>
    %6 = arith.mulf %4, %4 : vector<24x32xf32>
    %7 = arith.mulf %5, %5 : vector<24x32xf32>
    %8 = arith.addf %6, %7 : vector<24x32xf32>
    %9 = math.sqrt %8 : vector<24x32xf32>
    %c0_4 = arith.constant 0 : index
    %c0_5 = arith.constant 0 : index
    %c0_6 = arith.constant 0 : index
    %10 = vector.load %arg4[%c0_4, %c0_5, %c0_6] : memref<1x24x32xf32, #tpu.memory_space<vmem>>, vector<1x24x32xf32>
    %11 = vector.shape_cast %10 : vector<1x24x32xf32> to vector<24x32xf32>
    %12 = vector.shape_cast %9 : vector<24x32xf32> to vector<1x24x32xf32>
    tpu.vector_store %arg4[%c0_4, %c0_5, %c0_6], %12 {strides = array<i32>} : memref<1x24x32xf32, #tpu.memory_space<vmem>>, vector<1x24x32xf32>,
    return
  }
  func.func @transform_0(%arg0: i32, %arg1: i32) -> (i32, i32, i32) {
    %c0_i32 = arith.constant 0 : i32
    %c0_i32_0 = arith.constant 0 : i32
    return %arg0, %arg1, %c0_i32 : i32, i32, i32
  }
  func.func @transform_1(%arg0: i32, %arg1: i32) -> (i32, i32) {
    %c0_i32 = arith.constant 0 : i32
    %c0_i32_0 = arith.constant 0 : i32
    %c0_i32_1 = arith.constant 0 : i32
    return %c0_i32, %c0_i32_0 : i32, i32
  }
  func.func @transform_2(%arg0: i32, %arg1: i32) -> (i32, i32, i32) {
    %c0_i32 = arith.constant 0 : i32
    %c0_i32_0 = arith.constant 0 : i32
    return %arg0, %c0_i32, %arg1 : i32, i32, i32
  }
}

</mosaic_0001>

<llo_original>
// kernel: tpu_custom_call.1
$region0: #{tpu_custom_call.1}
  #allocation0 [shape = 'u32[]', space=smem, size = 0x4, offset = 0x4, fixed_abs, tag = 'smem constant byte address 0x4 - core index']
  #allocation1 [shape = 'u32[144,128]{1,0:T(1,128)}', space=vmem, size = 0x12000, scoped, tag = 'internal scratch']
  %s0 = inlined_call_operand.vmem [shape: bf16[2,32,32], index: 0, kind: input, shape index: {}]
  %s1 = inlined_call_operand.vmem [shape: bf16[48,32], index: 1, kind: input, shape index: {}]
  %s2 = inlined_call_operand.hbm [shape: f32[2,24,32], index: 2, kind: output, shape index: {}]
  %s3 = sld [smem:[#allocation0]]
  $region41: #{tpu_custom_call.1} parent=0
    _
  %s5 = ssub.s32 1, %s3
  %s6 = scalar_select 0, %s5, %s3
  $region1: #{tpu_custom_call.1} parent=0
    #allocation2 [shape = 'u8[24576]{0}', space=vmem, size = 0x6000, scoped, tag = 'output window, operand 0']
    #allocation3 [shape = 's32[2]{0}', space=sflag, size = 0x8, scoped, tag = 'scoped memory for tpu_custom_call.1']
    %7 = vsyncpa [#allocation3], 0
    %s8 = scalar_lea.sflag [#allocation3], 1
    %9 = vsyncpa %s8, 0
    loop: start=0, step=1, limit=4
    $region2: #{tpu_custom_call.1} parent=1 // loop_pre_header
      _
    $region3: #{tpu_custom_call.1} parent=1 // loop_header
      %s11 = sphi 0, %s15
      %p12 = scmp.ge.s32.totalorder %s11, 4
      %s18 = sphi 0, %s30
      %s19 = sphi 0, %s26
      %s20 = sphi 0, %s18
      %s21 = sphi 0, %s19
      %s22 = sphi 0, %s20
      %s23 = sphi 0, %s21
      %s35 = sphi 0, %s37
      %s38 = sphi 0, %s35
      %s39 = sphi 0, %s38
      %s55 = sphi 0, %s39
      %s59 = sphi 0, %s59
      %s61 = sphi 0, %s59
      %s62 = sphi 0, %s61
      %s76 = sphi 0, %s62
      %s84 = sphi 0, %s86
      %s87 = sphi 0, %s84
      %s88 = sphi 0, %s87
      %s104 = sphi 0, %s88
    $region4: #{tpu_custom_call.1} parent=1 // loop_header_branch
      %14 = sbr.rel (%p12) target = $region8
    $region5: #{tpu_custom_call.1} parent=1 // loop_body
      %s16 = ssub.s32 %s11, 1
      %s17 = ssub.s32 %s11, 2
      %s24 = sadd.s32 1, %s19
      %p25 = scmp.ge.s32.totalorder %s24, 1
      %s26 = scalar_select %p25, 0, %s24
      %s27 = sadd.s32 1, %s18
      %s28 = scalar_select %p25, %s27, %s18
      %p29 = scmp.ge.s32.totalorder %s28, 2
      %s30 = scalar_select %p29, 0, %s28
      %s31 = ssub.s32 %s18, %s30
      %s32 = ssub.s32 %s19, %s26
      %s33 = sor.u32 %s31, %s32
      %p34 = scmp.eq.s32.totalorder %s33, 0
      %s36 = sadd.s32 %s35, 1
      %s37 = scalar_select %p34, %s35, %s36
      %p40 = pneg %p34
      %p41 = scmp.eq.s32.totalorder %s11, 1
      %p42 = por %p40, %p41
      %p43 = scmp.ne.s32.totalorder %s35, %s38
      %p44 = scmp.eq.s32.totalorder %s11, 0
      %p45 = por %p43, %p44
      %p46 = scmp.ne.s32.totalorder %s35, %s38
      %p47 = scmp.eq.s32.totalorder %s16, 1
      %p48 = por %p46, %p47
      %p49 = scmp.ne.s32.totalorder %s38, %s39
      %p50 = scmp.eq.s32.totalorder %s16, 0
      %p51 = por %p49, %p50
      %p52 = scmp.ne.s32.totalorder %s38, %s39
      %p53 = scmp.eq.s32.totalorder %s17, 1
      %p54 = por %p52, %p53
      %p56 = scmp.ne.s32.totalorder %s39, %s55
      %p57 = scmp.eq.s32.totalorder %s17, 0
      %p58 = por %p56, %p57
      %s60 = sadd.s32 %s59, 1
      %p63 = scmp.eq.s32.totalorder %s11, 1
      %p64 = scmp.ne.s32.totalorder %s59, %s61
      %p65 = scmp.eq.s32.totalorder %s11, 0
      %p66 = por %p64, %p65
      %p67 = scmp.ne.s32.totalorder %s59, %s61
      %p68 = scmp.eq.s32.totalorder %s16, 1
      %p69 = por %p67, %p68
      %p70 = scmp.ne.s32.totalorder %s61, %s62
      %p71 = scmp.eq.s32.totalorder %s16, 0
      %p72 = por %p70, %p71
      %p73 = scmp.ne.s32.totalorder %s61, %s62
      %p74 = scmp.eq.s32.totalorder %s17, 1
      %p75 = por %p73, %p74
      %p77 = scmp.ne.s32.totalorder %s62, %s76
      %p78 = scmp.eq.s32.totalorder %s17, 0
      %p79 = por %p77, %p78
      %s80 = ssub.s32 %s18, %s30
      %s81 = ssub.s32 %s19, %s26
      %s82 = sor.u32 %s80, %s81
      %p83 = scmp.eq.s32.totalorder %s82, 0
      %s85 = sadd.s32 %s84, 1
      %s86 = scalar_select %p83, %s84, %s85
      %p89 = pneg %p83
      %p90 = scmp.eq.s32.totalorder %s11, 1
      %p91 = por %p89, %p90
      %p92 = scmp.ne.s32.totalorder %s84, %s87
      %p93 = scmp.eq.s32.totalorder %s11, 0
      %p94 = por %p92, %p93
      %p95 = scmp.ne.s32.totalorder %s84, %s87
      %p96 = scmp.eq.s32.totalorder %s16, 1
      %p97 = por %p95, %p96
      %p98 = scmp.ne.s32.totalorder %s87, %s88
      %p99 = scmp.eq.s32.totalorder %s16, 0
      %p100 = por %p98, %p99
      %p101 = scmp.ne.s32.totalorder %s87, %s88
      %p102 = scmp.eq.s32.totalorder %s17, 1
      %p103 = por %p101, %p102
      %p105 = scmp.ne.s32.totalorder %s88, %s104
      %p106 = scmp.eq.s32.totalorder %s17, 0
      %p107 = por %p105, %p106
      %p108 = scmp.le.s32.totalorder 1, %s11
      %p109 = scmp.lt.s32.totalorder %s11, 3
      %p110 = pnand %p108, %p109
      %p111 = pneg %p110
      // Predicated region
      $region9: #{tpu_custom_call.1} parent=5 // pred_check
        _
      $region10: #{tpu_custom_call.1} parent=5 // pred_check_branch
        %113 = sbr.rel (%p110) target = $region12
      $region11: #{tpu_custom_call.1} parent=5 // pred_region
        %s114 = ssub.s32 %s11, 1
        // Predicated region
        $region13: #{tpu_custom_call.1} parent=11 // pred_check
          %p115 = pneg %p72
        $region14: #{tpu_custom_call.1} parent=11 // pred_check_branch
          %117 = sbr.rel (%p115) target = $region16
        $region15: #{tpu_custom_call.1} parent=11 // pred_region
          _
        $region16: #{tpu_custom_call.1} parent=11 // pred_fallthru
          _
      $region12: #{tpu_custom_call.1} parent=5 // pred_fallthru
        _
      %p118 = scmp.lt.s32.totalorder %s11, 2
      // Predicated region
      $region17: #{tpu_custom_call.1} parent=5 // pred_check
        %p119 = pneg %p118
      $region18: #{tpu_custom_call.1} parent=5 // pred_check_branch
        %121 = sbr.rel (%p119) target = $region20
      $region19: #{tpu_custom_call.1} parent=5 // pred_region
        // Predicated region
        $region21: #{tpu_custom_call.1} parent=19 // pred_check
          %p122 = pneg %p45
        $region22: #{tpu_custom_call.1} parent=19 // pred_check_branch
          %124 = sbr.rel (%p122) target = $region24
        $region23: #{tpu_custom_call.1} parent=19 // pred_region
          %s125 = smul.u32 4, %s19
          %p126 = scmp.lt.s32.totalorder %s18, 1
          %s127 = scalar_select %p126, %s18, 1
          %p128 = scmp.lt.s32.totalorder %s125, 3
          %s129 = scalar_select %p128, %s125, 3
          %s130 = smul.addr %s127, 4
          %s131 = sadd.s32 %s129, %s130
          %s132 = smul.addr %s131, 4
          %s133 = scalar_lea.vmem %s0, %s132
          %s134 = smul.u32 4, %s19
        $region24: #{tpu_custom_call.1} parent=19 // pred_fallthru
          _
      $region20: #{tpu_custom_call.1} parent=5 // pred_fallthru
        _
      %p135 = scmp.le.s32.totalorder 1, %s11
      %p136 = scmp.lt.s32.totalorder %s11, 3
      %p137 = pnand %p135, %p136
      %p138 = pneg %p137
      // Predicated region
      $region25: #{tpu_custom_call.1} parent=5 // pred_check
        _
      $region26: #{tpu_custom_call.1} parent=5 // pred_check_branch
        %140 = sbr.rel (%p137) target = $region28
      $region27: #{tpu_custom_call.1} parent=5 // pred_region
        %s141 = ssub.s32 %s11, 1
        %s142 = smul.u32 4, %s21
        %p143 = scmp.lt.s32.totalorder %s20, 1
        %s144 = scalar_select %p143, %s20, 1
        %p145 = scmp.lt.s32.totalorder %s142, 3
        %s146 = scalar_select %p145, %s142, 3
        %s147 = smul.addr %s144, 4
        %s148 = sadd.s32 %s146, %s147
        %s149 = smul.addr %s148, 4
        %s150 = scalar_lea.vmem %s0, %s149
        %p151 = pneg %p51
        %p152 = pneg %p48
        %p153 = pneg %p72
        %p154 = pneg %p69
        %p155 = pneg %p100
        %p156 = pneg %p97
        %s157 = sand.u32 %s87, 1
        %s158 = scalar_lea.sflag [#allocation3], %s157
        %s159 = sand.u32 %s87, 1
        %s160 = smul.addr %s159, 24
        %s161 = scalar_lea.vmem [#allocation2], %s160
        %s162 = smul.u32 4, %s21
        %p163 = scmp.lt.s32.totalorder %s20, 1
        %s164 = scalar_select %p163, %s20, 1
        %p165 = scmp.lt.s32.totalorder %s162, 3
        %s166 = scalar_select %p165, %s162, 3
        %s167 = smul.addr %s164, 4
        %s168 = sadd.s32 %s166, %s167
        %s169 = smul.addr %s168, 4
        %s170 = scalar_lea.vmem %s0, %s169
        %s171 = smul.u32 4, %s21
        %v173 = vld [vmem:[%s1] sm:$0xf]
        %v174 = vld [vmem:[%s1 + $0x4] sm:$0xf]
        %v175 = vld [vmem:[%s1 + $0x8] sm:$0xf]
        %v176 = vld [vmem:[%s1 + $0xc] sm:$0xf]
        %v177 = vld [vmem:[%s1 + $0x10] sm:$0xf]
        %v178 = vld [vmem:[%s1 + $0x14] sm:$0xf]
        %v179 = vld [vmem:[%s170] sm:$0xf]
        %v180 = vld [vmem:[%s170 + $0x4] sm:$0xf]
        %v181 = vld [vmem:[%s170 + $0x8] sm:$0xf]
        %v182 = vld [vmem:[%s170 + $0xc] sm:$0xf]
        %v189 = vunpack.c.l.b16 %v173
        %v190 = vunpack.c.l.b16 %v174
        %v191 = vunpack.c.l.b16 %v175
        %v192 = vunpack.c.l.b16 %v176
        %v193 = vunpack.c.l.b16 %v177
        %v194 = vunpack.c.l.b16 %v178
        %v195 = vpack.c.b16 %v190, %v189
        %v196 = vpack.c.b16 %v192, %v191
        %v197 = vpack.c.b16 %v194, %v193
        %v202 = vunpack.c.l.b16 %v179
        %v203 = vunpack.c.l.b16 %v180
        %v204 = vunpack.c.l.b16 %v181
        %v205 = vunpack.c.l.b16 %v182
        %v206 = vpack.c.b16 %v203, %v202
        %v207 = vpack.c.b16 %v205, %v204
        %vm208 = vcmask 261120
        %v210 = vsel %vm208, %v195, 0
        %v213 = vsel %vm208, %v196, 0
        %v216 = vsel %vm208, %v197, 0
        %v219 = vsel %vm208, %v206, 0
        %v222 = vsel %vm208, %v207, 0
        %224 = vmatprep.subr.bf16.mxu0 0
        %225 = vmatpush1.bf16.xpose.msra.mxu0 0
        %226 = vmatprep.subr.bf16.mxu0 0
        %227 = vmatpush1.bf16.xpose.msra.mxu0 0
        %228 = vmatprep.subr.bf16.mxu0 0
        %229 = vmatpush1.bf16.xpose.msra.mxu0 0
        %230 = vmatprep.subr.bf16.mxu0 0
        %231 = vmatpush1.bf16.xpose.msra.mxu0 0
        %232 = vmatprep.subr.bf16.mxu0 0
        %233 = vmatpush1.bf16.xpose.msra.mxu0 0
        %234 = vmatprep.subr.bf16.mxu0 0
        %235 = vmatpush1.bf16.xpose.msra.mxu0 0
        %236 = vmatprep.subr.bf16.mxu0 0
        %237 = vmatpush1.bf16.xpose.msra.mxu0 %v222
        %238 = vmatprep.subr.bf16.mxu0 0
        %239 = vmatpush1.bf16.xpose.msra.mxu0 %v219
        %240 = vmatprep.subr.bf16.mxu0 0
        %241 = vmatpush2.bf16.xpose.msra.mxu0 0
        %242 = vmatprep.subr.bf16.mxu0 0
        %243 = vmatpush2.bf16.xpose.msra.mxu0 0
        %244 = vmatprep.subr.bf16.mxu0 0
        %245 = vmatpush2.bf16.xpose.msra.mxu0 0
        %246 = vmatprep.subr.bf16.mxu0 0
        %247 = vmatpush2.bf16.xpose.msra.mxu0 0
        %248 = vmatprep.subr.bf16.mxu0 0
        %249 = vmatpush2.bf16.xpose.msra.mxu0 0
        %250 = vmatprep.subr.bf16.mxu0 0
        %251 = vmatpush2.bf16.xpose.msra.mxu0 0
        %252 = vmatprep.subr.bf16.mxu0 0
        %253 = vmatpush2.bf16.xpose.msra.mxu0 0
        %254 = vmatprep.subr.bf16.mxu0 0
        %255 = vmatpush2.bf16.xpose.msra.mxu0 0
        %256 = vmatprep.mubr.bf16.mxu0 0
        %257 = vmatmul.mubr.bf16.gmra.mxu0 %v210
        %v258 = vpop.f32.mrf.mxu0
        %v259 = vadd.f32 0.0, %v258
        %v260 = vpop.f32.mrf.mxu0
        %v261 = vpop.f32.mrf.mxu0
        %v262 = vadd.f32 0.0, %v261
        %v263 = vpop.f32.mrf.mxu0
        %264 = vmatprep.mubr.bf16.mxu0 0
        %265 = vmatmul.mubr.bf16.gmra.mxu0 %v213
        %v266 = vpop.f32.mrf.mxu0
        %v267 = vadd.f32 0.0, %v266
        %v268 = vpop.f32.mrf.mxu0
        %v269 = vpop.f32.mrf.mxu0
        %v270 = vadd.f32 0.0, %v269
        %v271 = vpop.f32.mrf.mxu0
        %272 = vmatprep.mubr.bf16.mxu0 0
        %273 = vmatmul.mubr.bf16.gmra.mxu0 %v216
        %v274 = vpop.f32.mrf.mxu0
        %v275 = vadd.f32 0.0, %v274
        %v276 = vpop.f32.mrf.mxu0
        %v277 = vpop.f32.mrf.mxu0
        %v278 = vadd.f32 0.0, %v277
        %v279 = vpop.f32.mrf.mxu0
        %280 = vdwg.mxu0
        %v281 = vmul.f32 %v259, %v259
        %v282 = vmul.f32 %v262, %v262
        %v283 = vmul.f32 %v267, %v267
        %v284 = vmul.f32 %v270, %v270
        %v285 = vmul.f32 %v275, %v275
        %v286 = vmul.f32 %v278, %v278
        %v287 = vadd.f32 %v281, %v284
        %v288 = vadd.f32 %v282, %v285
        %v289 = vadd.f32 %v283, %v286
        %v290 = vrsqrt.pop %v287
        %v291 = vmul.f32 %v287, %v290
        %vm292 = vcmp.eq.f32.partialorder %v287, inf
        %v293 = vsel %vm292, %v287, %v291
        %vm294 = vcmp.eq.f32.partialorder %v287, 0.0
        %v295 = vand.u32 %v287, 2147483648
        %v296 = vsel %vm294, %v295, %v293
        %v297 = vrsqrt.pop %v288
        %v298 = vmul.f32 %v288, %v297
        %vm299 = vcmp.eq.f32.partialorder %v288, inf
        %v300 = vsel %vm299, %v288, %v298
        %vm301 = vcmp.eq.f32.partialorder %v288, 0.0
        %v302 = vand.u32 %v288, 2147483648
        %v303 = vsel %vm301, %v302, %v300
        %v304 = vrsqrt.pop %v289
        %v305 = vmul.f32 %v289, %v304
        %vm306 = vcmp.eq.f32.partialorder %v289, inf
        %v307 = vsel %vm306, %v289, %v305
        %vm308 = vcmp.eq.f32.partialorder %v289, 0.0
        %v309 = vand.u32 %v289, 2147483648
        %v310 = vsel %vm308, %v309, %v307
        %311 = vst.msk [vmem:[%s161] sm:$0xff] %vm208, %v296
        %312 = vst.msk [vmem:[%s161 + $0x8] sm:$0xff] %vm208, %v303
        %313 = vst.msk [vmem:[%s161 + $0x10] sm:$0xff] %vm208, %v310
        %s314 = sand.u32 %s87, 1
        %s315 = scalar_lea.sflag [#allocation3], %s314
        %s316 = sand.u32 %s87, 1
        %s317 = smul.addr %s316, 24
        %s318 = scalar_lea.vmem [#allocation2], %s317
        // Predicated region
        $region29: #{tpu_custom_call.1} parent=27 // pred_check
          %p319 = pneg %p97
        $region30: #{tpu_custom_call.1} parent=27 // pred_check_branch
          %321 = sbr.rel (%p319) target = $region32
        $region31: #{tpu_custom_call.1} parent=27 // pred_region
          %s323 = ssub.s32 384, 384
          %324 = vsyncadd %s315, %s323
          %s325 = smul.addr %s20, 3
          %s326 = sadd.s32 %s21, %s325
          %s327 = smul.addr %s326, 128
          %s328 = scalar_lea.hbm %s2, %s327
          %s329 = sshll.u32 %s318, 4
          %s330 = int_to_ptr.vmem [resolvable:$true] %s329
          %335 = dma.vmem_to_hbm [thread:$0]  %s330, 384, %s328, %s315, 128, 128, 8
        $region32: #{tpu_custom_call.1} parent=27 // pred_fallthru
          _
      $region28: #{tpu_custom_call.1} parent=5 // pred_fallthru
        _
      %p336 = scmp.le.s32.totalorder 2, %s11
      // Predicated region
      $region33: #{tpu_custom_call.1} parent=5 // pred_check
        %p337 = pneg %p336
      $region34: #{tpu_custom_call.1} parent=5 // pred_check_branch
        %339 = sbr.rel (%p337) target = $region36
      $region35: #{tpu_custom_call.1} parent=5 // pred_region
        %s340 = ssub.s32 %s11, 2
        // Predicated region
        $region37: #{tpu_custom_call.1} parent=35 // pred_check
          %p341 = pneg %p103
        $region38: #{tpu_custom_call.1} parent=35 // pred_check_branch
          %343 = sbr.rel (%p341) target = $region40
        $region39: #{tpu_custom_call.1} parent=35 // pred_region
          %s344 = sand.u32 %s88, 1
          %s345 = scalar_lea.sflag [#allocation3], %s344
          %s346 = sand.u32 %s88, 1
          %s347 = smul.addr %s346, 24
          %s348 = scalar_lea.vmem [#allocation2], %s347
          %349 = dma.done %s345, 384
        $region40: #{tpu_custom_call.1} parent=35 // pred_fallthru
          _
      $region36: #{tpu_custom_call.1} parent=5 // pred_fallthru
        _
    $region6: #{tpu_custom_call.1} parent=1 // loop_footer
      %s15 = sadd.s32 1, %s11
    $region7: #{tpu_custom_call.1} parent=1 // loop_footer_branch
      %10 = sbr.rel target = $region3
    $region8: #{tpu_custom_call.1} parent=1 // loop_exit
      _
    %350 = vsyncpa [#allocation3], 1
    %s351 = scalar_lea.sflag [#allocation3], 1
    %352 = vsyncpa %s351, 1

</llo_original>
